<compile_context>
chip_gen: v7x
topology: tpu7x:2x2x1
jax: 0.10.0
libtpu: 0.0.40
codegen_flags: <defaults>
</compile_context>

<pallas_src>
import functools

import jax
import jax.numpy as jnp
from jax import lax
from jax.experimental import pallas as pl
from jax.experimental.pallas import tpu as pltpu

_MiB = 1024 * 1024


def _netvlad_kernel(x_ref, c_ref, b_ref, out_ref, *, alpha, normalize_input,
                    mm_dtype, approx_recip):
    # x_ref: (Bt, C, S)   c_ref: (K, C) f32   b_ref: (1, K) f32   out_ref: (Bt, K, C)
    eps = 1e-12
    bt, c_dim, s_len = x_ref.shape
    k = c_ref.shape[0]
    mm_dtype = jnp.dtype(mm_dtype)

    # (Bt, C, S) -> (Bt, S, C): put the descriptor dim C on the 128-lane axis.
    # Transpose in the *input* dtype (halves XLU volume for bf16 inputs).
    x_in = jnp.transpose(x_ref[...], (0, 2, 1))                      # (Bt, S, C)

    if normalize_input:
        x32 = x_in.astype(jnp.float32)
        ss = jnp.sum(x32 * x32, axis=-1, keepdims=True)              # ||x||^2, f32
        inv = lax.rsqrt(jnp.maximum(ss, eps * eps))                  # (Bt, S, 1)
        if x_in.dtype == mm_dtype:
            # Apply the scale in the MXU dtype: no (Bt,S,C) f32 copy on bf16 path.
            x_mm = x_in * inv.astype(mm_dtype)
        else:
            x_mm = (x32 * inv).astype(mm_dtype)
    else:
        x_mm = x_in.astype(mm_dtype)

    cent = c_ref[...]                                                # (K, C) f32
    c_mm = cent.astype(mm_dtype)

    # 1x1 conv == matmul: logits = 2*alpha*(x . c^T) + bias, bias = -alpha*||c||.
    # Flatten Bt*S rows so the MXU M dimension is dense; contract C directly.
    x2 = x_mm.reshape(bt * s_len, c_dim)
    dots = lax.dot_general(x2, c_mm, (((1,), (1,)), ((), ())),
                           preferred_element_type=jnp.float32)       # (Bt*S, K)
    logits = (2.0 * alpha) * dots + b_ref[...]

    # Softmax over the cluster axis.  The reciprocal is per-row and lands in the
    # EUP slot; only the bf16 MXU path uses the approximate variant so the f32
    # path tracks the reference.  (A lane-dense exp reshape would help on v5e
    # when K << 128 and the kernel stops being HBM-bound; not applied here.)
    m = jnp.max(logits, axis=-1, keepdims=True)
    e = jnp.exp(logits - m)
    l = jnp.sum(e, axis=-1, keepdims=True)
    a = e * pl.reciprocal(l, approx=approx_recip)                    # (Bt*S, K) f32

    # vlad[b,k,c] = sum_s a[b,s,k] * x[b,s,c] - (sum_s a[b,s,k]) * cent[k,c]
    a3 = a.reshape(bt, s_len, k)
    asum = jnp.sum(a3, axis=1)                                       # (Bt, K) f32
    # Batched dot contracting S directly (no hidden transpose of the big x tile).
    vlad = lax.dot_general(a3.astype(mm_dtype), x_mm,
                           (((1,), (1,)), ((0,), (0,))),
                           preferred_element_type=jnp.float32)       # (Bt, K, C)
    vlad = vlad - asum[:, :, None] * cent[None, :, :]

    # Fused intra-norm + global L2: with inv_k = rsqrt(max(rn_k, eps^2)) the
    # post-intra-norm global norm is gn = sum_k rn_k * inv_k^2, so one combined
    # scale inv_k * rsqrt(max(gn, eps^2)) replaces two full (Bt,K,C) passes.
    rn = jnp.sum(vlad * vlad, axis=-1, keepdims=True)                # (Bt, K, 1)
    inv_k = lax.rsqrt(jnp.maximum(rn, eps * eps))
    gn = jnp.sum(rn * (inv_k * inv_k), axis=1, keepdims=True)        # (Bt, 1, 1)
    g_inv = lax.rsqrt(jnp.maximum(gn, eps * eps))
    out_ref[...] = (vlad * (inv_k * g_inv)).astype(out_ref.dtype)


def _physical_vmem_bytes():
    """Per-core physical VMEM; conservative 64 MiB (v7x) if the query fails."""
    try:
        info = pltpu.get_tpu_info()
        v = getattr(info, "vmem_capacity_bytes", None)
        if v:
            return int(v)
    except Exception:
        pass
    return 64 * _MiB


def _plan_tiles(n, c, s, k, x_itemsize, out_itemsize, batch_tile=None):
    """Pick the batch tile Bt and a matching vmem_limit_bytes.

    The budget covers the double-buffered DMA blocks AND the in-kernel
    temporaries (transposed x, mm-dtype copies, vlad, softmax arrays), so the
    plan is safe on v7x's 64 MiB VMEM while still growing Bt on v5e/v6e.
    """
    phys = _physical_vmem_bytes()
    if phys <= 64 * _MiB:          # v7x-class: small VMEM, 2 TCs/chip
        scoped_cap = 48 * _MiB
        max_rows = 2048
    else:                          # v5e / v6e: 128 MiB physical VMEM
        scoped_cap = 80 * _MiB
        max_rows = 4096
    headroom = 4 * _MiB            # Mosaic internal scratch, semaphores, slack
    resident = 2 * (k * c * 4 + k * 4)                       # centroids + bias blocks
    dma = 2 * (c * s * x_itemsize + k * c * out_itemsize)    # x + out blocks, 2-deep
    # In-kernel temporaries per batch element (f32 worst case, with slack):
    #   transposed x / mm-dtype copy ~6*S*C, vlad + residual term ~8*K*C,
    #   logits/exp/softmax/a3 ~16*S*K.
    temps = 6 * s * c + 8 * k * c + 16 * s * k
    per_batch = dma + temps

    if batch_tile is not None:
        bt = int(max(1, min(batch_tile, n)))
    else:
        budget = max(per_batch, scoped_cap - headroom - resident)
        bt = max(1, budget // per_batch)
        bt = min(bt, max(1, max_rows // s))
        bt = min(bt, n)
        if n >= 2:
            bt = min(bt, pl.cdiv(n, 2))   # >=2 grid steps so both v7x TCs get work

    need = resident + bt * per_batch + headroom
    vmem_limit = int(min(scoped_cap, max(16 * _MiB, need)))
    return int(bt), vmem_limit


def netvlad_forward(x_nchw, centroids, alpha=100.0, normalize_input=True,
                    mxu_dtype=None, out_dtype=jnp.float32, batch_tile=None):
    """NetVLAD forward, matching the PyTorch module's forward.

    x_nchw:    (N, C, H, W) activations, f32 or bf16.  The kernel consumes x in
               whatever dtype it arrives; to get the halved-DMA benefit the
               *producer* should emit bf16 — a standalone cast here would add a
               full extra read+write HBM pass over x.
    centroids: (K, C) cluster centroids.
    mxu_dtype: None (bf16 MXU for bf16 x, else f32) or jnp.bfloat16 to cast MXU
               operands in-kernel even for f32 x (f32 accumulation; full MXU
               throughput on v6e/v7x when compute-bound).
    out_dtype: dtype of the returned (N, K*C) descriptor; bf16 halves writeback.
    """
    N, C, H, W = x_nchw.shape
    K = centroids.shape[0]
    S = H * W

    cent = centroids.astype(jnp.float32)
    # conv bias from NetVLAD._init_params: -alpha * ||centroid_k||_2, tiny (1, K).
    bias = (-alpha * jnp.sqrt(jnp.sum(cent * cent, axis=1))).reshape(1, K)
    bias = bias.astype(jnp.float32)

    # NCHW -> (N, C, S) is a trailing-dim merge: layout-free, no extra HBM pass.
    x_ncs = x_nchw.reshape(N, C, S)
    x_dtype = jnp.dtype(x_ncs.dtype)
    out_dtype = jnp.dtype(out_dtype)
    if mxu_dtype is not None:
        mm_dtype = jnp.dtype(mxu_dtype)
    else:
        mm_dtype = (jnp.dtype(jnp.bfloat16) if x_dtype == jnp.dtype(jnp.bfloat16)
                    else jnp.dtype(jnp.float32))
    approx_recip = mm_dtype == jnp.dtype(jnp.bfloat16)

    bt, vmem_limit = _plan_tiles(N, C, S, K, x_dtype.itemsize, out_dtype.itemsize,
                                 batch_tile=batch_tile)
    grid = (pl.cdiv(N, bt),)
    # Note: if N % bt != 0 the padded tail block computes on unspecified VMEM
    # rows; rows are per-batch independent so valid outputs are unaffected.

    # Advisory cost so XLA can overlap the producer/consumer with this
    # HBM-bound kernel.
    cost = pl.CostEstimate(
        flops=int(4 * N * S * C * K + 10 * N * S * C + 6 * N * K * C),
        transcendentals=int(N * S * K + N * S + N * K + N),
        bytes_accessed=int(N * C * S * x_dtype.itemsize
                           + N * K * C * out_dtype.itemsize
                           + K * C * 4 + K * 4),
    )

    kernel = functools.partial(_netvlad_kernel, alpha=float(alpha),
                               normalize_input=normalize_input,
                               mm_dtype=mm_dtype, approx_recip=approx_recip)

    out = pl.pallas_call(
        kernel,
        out_shape=jax.ShapeDtypeStruct((N, K, C), out_dtype),
        grid_spec=pltpu.PrefetchScalarGridSpec(
            num_scalar_prefetch=0,
            grid=grid,
            in_specs=[
                pl.BlockSpec((bt, C, S), lambda n: (n, 0, 0)),   # x: Bt batches/step
                pl.BlockSpec((K, C), lambda n: (0, 0)),          # centroids (resident)
                pl.BlockSpec((1, K), lambda n: (0, 0)),          # conv bias (resident)
            ],
            out_specs=pl.BlockSpec((bt, K, C), lambda n: (n, 0, 0)),
        ),
        compiler_params=pltpu.CompilerParams(
            dimension_semantics=("parallel",),   # batch tiles shard across v7x TCs
            vmem_limit_bytes=int(vmem_limit),
        ),
        cost_estimate=cost,
    )(x_ncs, cent, bias)

    return out.reshape(N, K * C)


def netvlad_reference(x_nchw, centroids, alpha=100.0, normalize_input=True):
    """Pure-JAX reference mirroring the PyTorch forward, for validation."""
    eps = 1e-12
    N, C, H, W = x_nchw.shape
    x = x_nchw.astype(jnp.float32)
    if normalize_input:
        nrm = jnp.sqrt(jnp.sum(x * x, axis=1, keepdims=True))
        x = x / jnp.maximum(nrm, eps)
    w = 2.0 * alpha * centroids                                  # (K, C)
    b = -alpha * jnp.sqrt(jnp.sum(centroids * centroids, axis=1))
    xf = x.reshape(N, C, -1)                                     # (N, C, S)
    logits = jnp.einsum('kc,ncs->nks', w, xf) + b[None, :, None]
    sa = jax.nn.softmax(logits, axis=1)                          # (N, K, S)
    residual = xf[:, None, :, :] - centroids[None, :, :, None]   # (N, K, C, S)
    residual = residual * sa[:, :, None, :]
    vlad = residual.sum(axis=-1)                                 # (N, K, C)
    rn = jnp.sqrt(jnp.sum(vlad * vlad, axis=2, keepdims=True))
    vlad = vlad / jnp.maximum(rn, eps)
    vlad = vlad.reshape(N, -1)
    gn = jnp.sqrt(jnp.sum(vlad * vlad, axis=1, keepdims=True))
    return vlad / jnp.maximum(gn, eps)


if __name__ == "__main__":
    # Small, TPU-friendly shapes: batch=2, dim=128 (lane-aligned), 16 clusters, 8x8 map.
    N, C, H, W = 2, 128, 8, 8
    K = 16
    alpha = 100.0

    key = jax.random.PRNGKey(0)
    kx, kc = jax.random.split(key)
    x = jax.random.normal(kx, (N, C, H, W), dtype=jnp.float32)
    centroids = jax.random.uniform(kc, (K, C), dtype=jnp.float32)  # torch.rand equiv.

    # f32 path: validated against the PyTorch-mirroring reference.
    out = netvlad_forward(x, centroids, alpha=alpha, normalize_input=True)
    out = jax.block_until_ready(out)
    ref = netvlad_reference(x, centroids, alpha=alpha, normalize_input=True)
    assert out.shape == (N, K * C), out.shape
    max_err = float(jnp.max(jnp.abs(out - ref)))
    assert jnp.allclose(out, ref, rtol=2e-3, atol=2e-3), max_err

    # Decoupled MXU dtype (v6e feedback): f32 x in HBM, bf16 MXU operands in-kernel.
    # alpha=100 makes assignments near-hard, so bf16 logits can legitimately flip
    # borderline clusters vs. the f32 reference — smoke-check shape/finiteness only.
    out_mxu = netvlad_forward(x, centroids, alpha=alpha, normalize_input=True,
                              mxu_dtype=jnp.bfloat16)
    out_mxu = jax.block_until_ready(out_mxu)
    assert out_mxu.shape == (N, K * C), out_mxu.shape
    assert bool(jnp.all(jnp.isfinite(out_mxu)))

    # bf16-producer path (x already bf16 in HBM halves x DMA; the cast below is
    # only to exercise the branch in this demo — in production the producer
    # should emit bf16 directly instead of paying a standalone cast pass).
    out_bf16 = netvlad_forward(x.astype(jnp.bfloat16), centroids, alpha=alpha,
                               normalize_input=True)
    out_bf16 = jax.block_until_ready(out_bf16)
    assert out_bf16.shape == (N, K * C), out_bf16.shape
    assert bool(jnp.all(jnp.isfinite(out_bf16)))

    print("KERNEL_OK")
</pallas_src>

<mosaic_0001>
module attributes {stable_mosaic.version = 11 : i64} {
  func.func @_netvlad_kernel(%arg0: i32, %arg1: memref<1x128x64xf32, #tpu.memory_space<vmem>>, %arg2: memref<16x128xf32, #tpu.memory_space<vmem>>, %arg3: memref<1x16xf32, #tpu.memory_space<vmem>>, %arg4: memref<1x16x128xf32, #tpu.memory_space<vmem>>) attributes {dimension_semantics = [#tpu.dimension_semantics<parallel>], iteration_bounds = array<i64: 2>, scalar_prefetch = 0 : i64, scratch_operands = 0 : i64, tpu.core_type = #tpu.core_type<tc>, window_params = [{transform_indices = @transform_0, window_bounds = array<i64: 1, 128, 64>}, {pipeline_mode = #tpu.pipeline_mode<synchronous>, transform_indices = @transform_1, window_bounds = array<i64: 16, 128>}, {pipeline_mode = #tpu.pipeline_mode<synchronous>, transform_indices = @transform_2, window_bounds = array<i64: 1, 16>}, {transform_indices = @transform_3, window_bounds = array<i64: 1, 16, 128>}]} {
    %c0 = arith.constant 0 : index
    %c0_0 = arith.constant 0 : index
    %c0_1 = arith.constant 0 : index
    %0 = vector.load %arg1[%c0, %c0_0, %c0_1] : memref<1x128x64xf32, #tpu.memory_space<vmem>>, vector<1x128x64xf32>
    %1 = tpu.transpose %0, [0, 2, 1] : vector<1x128x64xf32> -> vector<1x64x128xf32>
    %2 = arith.mulf %1, %1 : vector<1x64x128xf32>
    %cst = arith.constant dense<0.000000e+00> : vector<1x64xf32>
    %3 = vector.multi_reduction <add>, %2, %cst [2] : vector<1x64x128xf32> to vector<1x64xf32>
    %4 = vector.shape_cast %3 : vector<1x64xf32> to vector<1x64x1xf32>
    %cst_2 = arith.constant 1.000000e-24 : f32
    %5 = vector.broadcast %cst_2 : f32 to vector<1x64x1xf32>
    %6 = arith.maximumf %4, %5 : vector<1x64x1xf32>
    %7 = math.rsqrt %6 : vector<1x64x1xf32>
    %8 = vector.broadcast %7 : vector<1x64x1xf32> to vector<1x64x128xf32>
    %9 = arith.mulf %1, %8 : vector<1x64x128xf32>
    %c0_3 = arith.constant 0 : index
    %c0_4 = arith.constant 0 : index
    %10 = vector.load %arg2[%c0_3, %c0_4] : memref<16x128xf32, #tpu.memory_space<vmem>>, vector<16x128xf32>
    %11 = vector.shape_cast %9 : vector<1x64x128xf32> to vector<64x128xf32>
    %cst_5 = arith.constant dense<0.000000e+00> : vector<64x16xf32>
    %12 = tpu.matmul %11, %10, %cst_5 {dimension_numbers = #tpu.dot_dimension_numbers<[1], [1], [0], [0], [0, 0, 1, 0], [], []>} : vector<64x128xf32>, vector<16x128xf32>, vector<64x16xf32> -> vector<64x16xf32>
    %cst_6 = arith.constant 2.000000e+02 : f32
    %13 = vector.broadcast %cst_6 : f32 to vector<64x16xf32>
    %14 = arith.mulf %13, %12 : vector<64x16xf32>
    %c0_7 = arith.constant 0 : index
    %c0_8 = arith.constant 0 : index
    %15 = vector.load %arg3[%c0_7, %c0_8] : memref<1x16xf32, #tpu.memory_space<vmem>>, vector<1x16xf32>
    %16 = vector.broadcast %15 : vector<1x16xf32> to vector<64x16xf32>
    %17 = arith.addf %14, %16 : vector<64x16xf32>
    %cst_9 = arith.constant dense<0xFF800000> : vector<64xf32>
    %18 = vector.multi_reduction <maximumf>, %17, %cst_9 [1] : vector<64x16xf32> to vector<64xf32>
    %19 = vector.shape_cast %18 : vector<64xf32> to vector<64x1xf32>
    %20 = vector.broadcast %19 : vector<64x1xf32> to vector<64x16xf32>
    %21 = arith.subf %17, %20 : vector<64x16xf32>
    %22 = math.exp %21 : vector<64x16xf32>
    %cst_10 = arith.constant dense<0.000000e+00> : vector<64xf32>
    %23 = vector.multi_reduction <add>, %22, %cst_10 [1] : vector<64x16xf32> to vector<64xf32>
    %24 = vector.shape_cast %23 : vector<64xf32> to vector<64x1xf32>
    %25 = tpu.reciprocal %24 : vector<64x1xf32> -> vector<64x1xf32>
    %26 = vector.broadcast %25 : vector<64x1xf32> to vector<64x16xf32>
    %27 = arith.mulf %22, %26 : vector<64x16xf32>
    %28 = vector.shape_cast %27 : vector<64x16xf32> to vector<1x64x16xf32>
    %cst_11 = arith.constant dense<0.000000e+00> : vector<1x16xf32>
    %29 = vector.multi_reduction <add>, %28, %cst_11 [1] : vector<1x64x16xf32> to vector<1x16xf32>
    %cst_12 = arith.constant dense<0.000000e+00> : vector<1x16x128xf32>
    %30 = tpu.matmul %28, %9, %cst_12 {dimension_numbers = #tpu.dot_dimension_numbers<[1], [1], [2], [2], [0, 0, 0, 2, 1, 2], [0], [0]>} : vector<1x64x16xf32>, vector<1x64x128xf32>, vector<1x16x128xf32> -> vector<1x16x128xf32>
    %31 = vector.shape_cast %29 : vector<1x16xf32> to vector<1x16x1xf32>
    %32 = vector.shape_cast %10 : vector<16x128xf32> to vector<1x16x128xf32>
    %33 = vector.broadcast %31 : vector<1x16x1xf32> to vector<1x16x128xf32>
    %34 = arith.mulf %33, %32 : vector<1x16x128xf32>
    %35 = arith.subf %30, %34 : vector<1x16x128xf32>
    %36 = arith.mulf %35, %35 : vector<1x16x128xf32>
    %cst_13 = arith.constant dense<0.000000e+00> : vector<1x16xf32>
    %37 = vector.multi_reduction <add>, %36, %cst_13 [2] : vector<1x16x128xf32> to vector<1x16xf32>
    %38 = vector.shape_cast %37 : vector<1x16xf32> to vector<1x16x1xf32>
    %cst_14 = arith.constant 1.000000e-24 : f32
    %39 = vector.broadcast %cst_14 : f32 to vector<1x16x1xf32>
    %40 = arith.maximumf %38, %39 : vector<1x16x1xf32>
    %41 = math.rsqrt %40 : vector<1x16x1xf32>
    %42 = arith.mulf %41, %41 : vector<1x16x1xf32>
    %43 = arith.mulf %38, %42 : vector<1x16x1xf32>
    %cst_15 = arith.constant dense<0.000000e+00> : vector<1x1xf32>
    %44 = vector.multi_reduction <add>, %43, %cst_15 [1] : vector<1x16x1xf32> to vector<1x1xf32>
    %45 = vector.shape_cast %44 : vector<1x1xf32> to vector<1x1x1xf32>
    %cst_16 = arith.constant 1.000000e-24 : f32
    %46 = vector.broadcast %cst_16 : f32 to vector<1x1x1xf32>
    %47 = arith.maximumf %45, %46 : vector<1x1x1xf32>
    %48 = math.rsqrt %47 : vector<1x1x1xf32>
    %49 = vector.broadcast %48 : vector<1x1x1xf32> to vector<1x16x1xf32>
    %50 = arith.mulf %41, %49 : vector<1x16x1xf32>
    %51 = vector.broadcast %50 : vector<1x16x1xf32> to vector<1x16x128xf32>
    %52 = arith.mulf %35, %51 : vector<1x16x128xf32>
    %c0_17 = arith.constant 0 : index
    %c0_18 = arith.constant 0 : index
    %c0_19 = arith.constant 0 : index
    %53 = vector.load %arg4[%c0_17, %c0_18, %c0_19] : memref<1x16x128xf32, #tpu.memory_space<vmem>>, vector<1x16x128xf32>
    tpu.vector_store %arg4[%c0_17, %c0_18, %c0_19], %52 {strides = array<i32>} : memref<1x16x128xf32, #tpu.memory_space<vmem>>, vector<1x16x128xf32>,
    return
  }
  func.func @transform_0(%arg0: i32) -> (i32, i32, i32) {
    %c0_i32 = arith.constant 0 : i32
    %c0_i32_0 = arith.constant 0 : i32
    %c0_i32_1 = arith.constant 0 : i32
    return %arg0, %c0_i32, %c0_i32_0 : i32, i32, i32
  }
  func.func @transform_1(%arg0: i32) -> (i32, i32) {
    %c0_i32 = arith.constant 0 : i32
    %c0_i32_0 = arith.constant 0 : i32
    %c0_i32_1 = arith.constant 0 : i32
    return %c0_i32, %c0_i32_0 : i32, i32
  }
  func.func @transform_2(%arg0: i32) -> (i32, i32) {
    %c0_i32 = arith.constant 0 : i32
    %c0_i32_0 = arith.constant 0 : i32
    %c0_i32_1 = arith.constant 0 : i32
    return %c0_i32, %c0_i32_0 : i32, i32
  }
  func.func @transform_3(%arg0: i32) -> (i32, i32, i32) {
    %c0_i32 = arith.constant 0 : i32
    %c0_i32_0 = arith.constant 0 : i32
    %c0_i32_1 = arith.constant 0 : i32
    return %arg0, %c0_i32, %c0_i32_0 : i32, i32, i32
  }
}

</mosaic_0001>

<llo_original>
// kernel: tpu_custom_call.1
$region0: #{tpu_custom_call.1}
  #allocation0 [shape = 'u32[]', space=smem, size = 0x4, offset = 0x4, fixed_abs, tag = 'smem constant byte address 0x4 - core index']
  #allocation1 [shape = 'u32[144,128]{1,0:T(1,128)}', space=vmem, size = 0x12000, scoped, tag = 'internal scratch']
  %s0 = inlined_call_operand.vmem [shape: f32[2,128,64], index: 0, kind: input, shape index: {}]
  %s1 = inlined_call_operand.vmem [shape: f32[16,128], index: 1, kind: input, shape index: {}]
  %s2 = inlined_call_operand.vmem [shape: f32[1,16], index: 2, kind: input, shape index: {}]
  %s3 = inlined_call_operand.hbm [shape: f32[2,16,128], index: 3, kind: output, shape index: {}]
  %s4 = sld [smem:[#allocation0]]
  $region45: #{tpu_custom_call.1} parent=0
    _
  %s6 = ssub.s32 1, %s4
  %s7 = scalar_select 0, %s6, %s4
  $region1: #{tpu_custom_call.1} parent=0
    #allocation2 [shape = 'u8[16384]{0}', space=vmem, size = 0x4000, scoped, tag = 'output window, operand 0']
    #allocation3 [shape = 's32[2]{0}', space=sflag, size = 0x8, scoped, tag = 'scoped memory for tpu_custom_call.1']
    %8 = vsyncpa [#allocation3], 0
    %s9 = scalar_lea.sflag [#allocation3], 1
    %10 = vsyncpa %s9, 0
    loop: start=0, step=1, limit=4
    $region2: #{tpu_custom_call.1} parent=1 // loop_pre_header
      _
    $region3: #{tpu_custom_call.1} parent=1 // loop_header
      %s12 = sphi 0, %s16
      %p13 = scmp.ge.s32.totalorder %s12, 4
      %s22 = sphi 0, %s24
      %s25 = sphi 0, %s22
      %s26 = sphi 0, %s25
      %s42 = sphi 0, %s26
      %s46 = sphi 0, %s46
      %s48 = sphi 0, %s46
      %s49 = sphi 0, %s48
      %s63 = sphi 0, %s49
      %s67 = sphi 0, %s67
      %s69 = sphi 0, %s67
      %s70 = sphi 0, %s69
      %s84 = sphi 0, %s70
      %s90 = sphi 0, %s92
      %s93 = sphi 0, %s90
      %s94 = sphi 0, %s93
      %s110 = sphi 0, %s94
    $region4: #{tpu_custom_call.1} parent=1 // loop_header_branch
      %15 = sbr.rel (%p13) target = $region8
    $region5: #{tpu_custom_call.1} parent=1 // loop_body
      %s17 = ssub.s32 %s12, 1
      %s18 = ssub.s32 %s12, 2
      %s19 = sadd.s32 %s12, 1
      %s20 = ssub.s32 %s12, %s19
      %p21 = scmp.eq.s32.totalorder %s20, 0
      %s23 = sadd.s32 %s22, 1
      %s24 = scalar_select %p21, %s22, %s23
      %p27 = pneg %p21
      %p28 = scmp.eq.s32.totalorder %s12, 1
      %p29 = por %p27, %p28
      %p30 = scmp.ne.s32.totalorder %s22, %s25
      %p31 = scmp.eq.s32.totalorder %s12, 0
      %p32 = por %p30, %p31
      %p33 = scmp.ne.s32.totalorder %s22, %s25
      %p34 = scmp.eq.s32.totalorder %s17, 1
      %p35 = por %p33, %p34
      %p36 = scmp.ne.s32.totalorder %s25, %s26
      %p37 = scmp.eq.s32.totalorder %s17, 0
      %p38 = por %p36, %p37
      %p39 = scmp.ne.s32.totalorder %s25, %s26
      %p40 = scmp.eq.s32.totalorder %s18, 1
      %p41 = por %p39, %p40
      %p43 = scmp.ne.s32.totalorder %s26, %s42
      %p44 = scmp.eq.s32.totalorder %s18, 0
      %p45 = por %p43, %p44
      %s47 = sadd.s32 %s46, 1
      %p50 = scmp.eq.s32.totalorder %s12, 1
      %p51 = scmp.ne.s32.totalorder %s46, %s48
      %p52 = scmp.eq.s32.totalorder %s12, 0
      %p53 = por %p51, %p52
      %p54 = scmp.ne.s32.totalorder %s46, %s48
      %p55 = scmp.eq.s32.totalorder %s17, 1
      %p56 = por %p54, %p55
      %p57 = scmp.ne.s32.totalorder %s48, %s49
      %p58 = scmp.eq.s32.totalorder %s17, 0
      %p59 = por %p57, %p58
      %p60 = scmp.ne.s32.totalorder %s48, %s49
      %p61 = scmp.eq.s32.totalorder %s18, 1
      %p62 = por %p60, %p61
      %p64 = scmp.ne.s32.totalorder %s49, %s63
      %p65 = scmp.eq.s32.totalorder %s18, 0
      %p66 = por %p64, %p65
      %s68 = sadd.s32 %s67, 1
      %p71 = scmp.eq.s32.totalorder %s12, 1
      %p72 = scmp.ne.s32.totalorder %s67, %s69
      %p73 = scmp.eq.s32.totalorder %s12, 0
      %p74 = por %p72, %p73
      %p75 = scmp.ne.s32.totalorder %s67, %s69
      %p76 = scmp.eq.s32.totalorder %s17, 1
      %p77 = por %p75, %p76
      %p78 = scmp.ne.s32.totalorder %s69, %s70
      %p79 = scmp.eq.s32.totalorder %s17, 0
      %p80 = por %p78, %p79
      %p81 = scmp.ne.s32.totalorder %s69, %s70
      %p82 = scmp.eq.s32.totalorder %s18, 1
      %p83 = por %p81, %p82
      %p85 = scmp.ne.s32.totalorder %s70, %s84
      %p86 = scmp.eq.s32.totalorder %s18, 0
      %p87 = por %p85, %p86
      %s88 = ssub.s32 %s12, %s19
      %p89 = scmp.eq.s32.totalorder %s88, 0
      %s91 = sadd.s32 %s90, 1
      %s92 = scalar_select %p89, %s90, %s91
      %p95 = pneg %p89
      %p96 = scmp.eq.s32.totalorder %s12, 1
      %p97 = por %p95, %p96
      %p98 = scmp.ne.s32.totalorder %s90, %s93
      %p99 = scmp.eq.s32.totalorder %s12, 0
      %p100 = por %p98, %p99
      %p101 = scmp.ne.s32.totalorder %s90, %s93
      %p102 = scmp.eq.s32.totalorder %s17, 1
      %p103 = por %p101, %p102
      %p104 = scmp.ne.s32.totalorder %s93, %s94
      %p105 = scmp.eq.s32.totalorder %s17, 0
      %p106 = por %p104, %p105
      %p107 = scmp.ne.s32.totalorder %s93, %s94
      %p108 = scmp.eq.s32.totalorder %s18, 1
      %p109 = por %p107, %p108
      %p111 = scmp.ne.s32.totalorder %s94, %s110
      %p112 = scmp.eq.s32.totalorder %s18, 0
      %p113 = por %p111, %p112
      %p114 = scmp.le.s32.totalorder 1, %s12
      %p115 = scmp.lt.s32.totalorder %s12, 3
      %p116 = pnand %p114, %p115
      %p117 = pneg %p116
      // Predicated region
      $region9: #{tpu_custom_call.1} parent=5 // pred_check
        _
      $region10: #{tpu_custom_call.1} parent=5 // pred_check_branch
        %119 = sbr.rel (%p116) target = $region12
      $region11: #{tpu_custom_call.1} parent=5 // pred_region
        %s120 = ssub.s32 %s12, 1
        // Predicated region
        $region13: #{tpu_custom_call.1} parent=11 // pred_check
          %p121 = pneg %p59
        $region14: #{tpu_custom_call.1} parent=11 // pred_check_branch
          %123 = sbr.rel (%p121) target = $region16
        $region15: #{tpu_custom_call.1} parent=11 // pred_region
          _
        $region16: #{tpu_custom_call.1} parent=11 // pred_fallthru
          _
        // Predicated region
        $region17: #{tpu_custom_call.1} parent=11 // pred_check
          %p124 = pneg %p80
        $region18: #{tpu_custom_call.1} parent=11 // pred_check_branch
          %126 = sbr.rel (%p124) target = $region20
        $region19: #{tpu_custom_call.1} parent=11 // pred_region
          _
        $region20: #{tpu_custom_call.1} parent=11 // pred_fallthru
          _
      $region12: #{tpu_custom_call.1} parent=5 // pred_fallthru
        _
      %p127 = scmp.lt.s32.totalorder %s12, 2
      // Predicated region
      $region21: #{tpu_custom_call.1} parent=5 // pred_check
        %p128 = pneg %p127
      $region22: #{tpu_custom_call.1} parent=5 // pred_check_branch
        %130 = sbr.rel (%p128) target = $region24
      $region23: #{tpu_custom_call.1} parent=5 // pred_region
        // Predicated region
        $region25: #{tpu_custom_call.1} parent=23 // pred_check
          %p131 = pneg %p32
        $region26: #{tpu_custom_call.1} parent=23 // pred_check_branch
          %133 = sbr.rel (%p131) target = $region28
        $region27: #{tpu_custom_call.1} parent=23 // pred_region
          %p134 = scmp.lt.s32.totalorder %s12, 1
          %s135 = scalar_select %p134, %s12, 1
          %s136 = smul.addr %s135, 16
          %s137 = smul.addr %s136, 8
          %s138 = scalar_lea.vmem %s0, %s137
        $region28: #{tpu_custom_call.1} parent=23 // pred_fallthru
          _
      $region24: #{tpu_custom_call.1} parent=5 // pred_fallthru
        _
      %p139 = scmp.le.s32.totalorder 1, %s12
      %p140 = scmp.lt.s32.totalorder %s12, 3
      %p141 = pnand %p139, %p140
      %p142 = pneg %p141
      // Predicated region
      $region29: #{tpu_custom_call.1} parent=5 // pred_check
        _
      $region30: #{tpu_custom_call.1} parent=5 // pred_check_branch
        %144 = sbr.rel (%p141) target = $region32
      $region31: #{tpu_custom_call.1} parent=5 // pred_region
        %s145 = ssub.s32 %s12, 1
        %p146 = scmp.lt.s32.totalorder %s17, 1
        %s147 = scalar_select %p146, %s17, 1
        %s148 = smul.addr %s147, 16
        %s149 = smul.addr %s148, 8
        %s150 = scalar_lea.vmem %s0, %s149
        %p151 = pneg %p38
        %p152 = pneg %p35
        %p153 = pneg %p59
        %p154 = pneg %p56
        %p155 = pneg %p80
        %p156 = pneg %p77
        %p157 = pneg %p106
        %p158 = pneg %p103
        %s159 = sand.u32 %s93, 1
        %s160 = scalar_lea.sflag [#allocation3], %s159
        %s161 = sand.u32 %s93, 1
        %s162 = smul.addr %s161, 16
        %s163 = scalar_lea.vmem [#allocation2], %s162
        %p164 = scmp.lt.s32.totalorder %s17, 1
        %s165 = scalar_select %p164, %s17, 1
        %s166 = smul.addr %s165, 16
        %s167 = smul.addr %s166, 8
        %s168 = scalar_lea.vmem %s0, %s167
        %v169 = vld [vmem:[%s168] sm:$0xff]
        %v170 = vld [vmem:[%s168 + $0x8] sm:$0xff]
        %v171 = vld [vmem:[%s168 + $0x10] sm:$0xff]
        %v172 = vld [vmem:[%s168 + $0x18] sm:$0xff]
        %v173 = vld [vmem:[%s168 + $0x20] sm:$0xff]
        %v174 = vld [vmem:[%s168 + $0x28] sm:$0xff]
        %v175 = vld [vmem:[%s168 + $0x30] sm:$0xff]
        %v176 = vld [vmem:[%s168 + $0x38] sm:$0xff]
        %v177 = vld [vmem:[%s168 + $0x40] sm:$0xff]
        %v178 = vld [vmem:[%s168 + $0x48] sm:$0xff]
        %v179 = vld [vmem:[%s168 + $0x50] sm:$0xff]
        %v180 = vld [vmem:[%s168 + $0x58] sm:$0xff]
        %v181 = vld [vmem:[%s168 + $0x60] sm:$0xff]
        %v182 = vld [vmem:[%s168 + $0x68] sm:$0xff]
        %v183 = vld [vmem:[%s168 + $0x70] sm:$0xff]
        %v184 = vld [vmem:[%s168 + $0x78] sm:$0xff]
        %185 = vxpose.xlu0.b32.start [1/16] %v169, 128
        %186 = vxpose.xlu0.b32.cont [2/16] %v170, 128
        %187 = vxpose.xlu0.b32.cont [3/16] %v171, 128
        %188 = vxpose.xlu0.b32.cont [4/16] %v172, 128
        %189 = vxpose.xlu0.b32.cont [5/16] %v173, 128
        %190 = vxpose.xlu0.b32.cont [6/16] %v174, 128
        %191 = vxpose.xlu0.b32.cont [7/16] %v175, 128
        %192 = vxpose.xlu0.b32.cont [8/16] %v176, 128
        %193 = vxpose.xlu0.b32.cont [9/16] %v177, 128
        %194 = vxpose.xlu0.b32.cont [10/16] %v178, 128
        %195 = vxpose.xlu0.b32.cont [11/16] %v179, 128
        %196 = vxpose.xlu0.b32.cont [12/16] %v180, 128
        %197 = vxpose.xlu0.b32.cont [13/16] %v181, 128
        %198 = vxpose.xlu0.b32.cont [14/16] %v182, 128
        %199 = vxpose.xlu0.b32.cont [15/16] %v183, 128
        %200 = vxpose.xlu0.b32.end [16/16] %v184, 128
        %v201 = vpop.trf.xlu0
        %v202 = vpop.trf.xlu0
        %v203 = vpop.trf.xlu0
        %v204 = vpop.trf.xlu0
        %v205 = vpop.trf.xlu0
        %v206 = vpop.trf.xlu0
        %v207 = vpop.trf.xlu0
        %v208 = vpop.trf.xlu0
        %v209 = vpop.trf.xlu0
        %v210 = vpop.trf.xlu0
        %v211 = vpop.trf.xlu0
        %v212 = vpop.trf.xlu0
        %v213 = vpop.trf.xlu0
        %v214 = vpop.trf.xlu0
        %v215 = vpop.trf.xlu0
        %v216 = vpop.trf.xlu0
        %v217 = vmul.f32 %v201, %v201
        %v218 = vmul.f32 %v202, %v202
        %v219 = vmul.f32 %v203, %v203
        %v220 = vmul.f32 %v204, %v204
        %v221 = vmul.f32 %v205, %v205
        %v222 = vmul.f32 %v206, %v206
        %v223 = vmul.f32 %v207, %v207
        %v224 = vmul.f32 %v208, %v208
        %225 = vadd.xlane.f32.xlu0 %v217
        %v226 = vpop.xlane.xlu0 %225
        %227 = vadd.xlane.f32.xlu0 %v218
        %v228 = vpop.xlane.xlu0 %227
        %229 = vadd.xlane.f32.xlu0 %v219
        %v230 = vpop.xlane.xlu0 %229
        %231 = vadd.xlane.f32.xlu0 %v220
        %v232 = vpop.xlane.xlu0 %231
        %233 = vadd.xlane.f32.xlu0 %v221
        %v234 = vpop.xlane.xlu0 %233
        %235 = vadd.xlane.f32.xlu0 %v222
        %v236 = vpop.xlane.xlu0 %235
        %237 = vadd.xlane.f32.xlu0 %v223
        %v238 = vpop.xlane.xlu0 %237
        %239 = vadd.xlane.f32.xlu0 %v224
        %v240 = vpop.xlane.xlu0 %239
        %v241 = vmax.f32 %v226, 1e-24
        %v242 = vmax.f32 %v228, 1e-24
        %v243 = vmax.f32 %v230, 1e-24
        %v244 = vmax.f32 %v232, 1e-24
        %v245 = vmax.f32 %v234, 1e-24
        %v246 = vmax.f32 %v236, 1e-24
        %v247 = vmax.f32 %v238, 1e-24
        %v248 = vmax.f32 %v240, 1e-24
        %v249 = vrsqrt.pop %v241
        %v250 = vrsqrt.pop %v242
        %v251 = vrsqrt.pop %v243
        %v252 = vrsqrt.pop %v244
        %v253 = vrsqrt.pop %v245
        %v254 = vrsqrt.pop %v246
        %v255 = vrsqrt.pop %v247
        %v256 = vrsqrt.pop %v248
        %v257 = vmul.f32 %v201, %v249
        %v258 = vmul.f32 %v202, %v250
        %v259 = vmul.f32 %v203, %v251
        %v260 = vmul.f32 %v204, %v252
        %v261 = vmul.f32 %v205, %v253
        %v262 = vmul.f32 %v206, %v254
        %v263 = vmul.f32 %v207, %v255
        %v264 = vmul.f32 %v208, %v256
        %v265 = vld [vmem:[%s1] sm:$0xff]
        %v266 = vld [vmem:[%s1 + $0x8] sm:$0xff]
        %267 = vmatprep.subr.mxu0 0.0
        %268 = vmatpush1.xpose.msra.mxu0 %v265
        %269 = vmatprep.subr.mxu0 0.0
        %270 = vmatpush1.xpose.msra.mxu0 %v266
        %271 = vmatprep.subr.mxu0 0.0
        %272 = vmatpush1.xpose.msra.mxu0 0.0
        %273 = vmatprep.subr.mxu0 0.0
        %274 = vmatpush1.xpose.msra.mxu0 0.0
        %275 = vmatprep.subr.mxu0 0.0
        %276 = vmatpush1.xpose.msra.mxu0 0.0
        %277 = vmatprep.subr.mxu0 0.0
        %278 = vmatpush1.xpose.msra.mxu0 0.0
        %279 = vmatprep.subr.mxu0 0.0
        %280 = vmatpush1.xpose.msra.mxu0 0.0
        %281 = vmatprep.subr.mxu0 0.0
        %282 = vmatpush1.xpose.msra.mxu0 0.0
        %283 = vmatprep.subr.mxu0 0.0
        %284 = vmatpush1.xpose.msra.mxu0 0.0
        %285 = vmatprep.subr.mxu0 0.0
        %286 = vmatpush1.xpose.msra.mxu0 0.0
        %287 = vmatprep.subr.mxu0 0.0
        %288 = vmatpush1.xpose.msra.mxu0 0.0
        %289 = vmatprep.subr.mxu0 0.0
        %290 = vmatpush1.xpose.msra.mxu0 0.0
        %291 = vmatprep.subr.mxu0 0.0
        %292 = vmatpush1.xpose.msra.mxu0 0.0
        %293 = vmatprep.subr.mxu0 0.0
        %294 = vmatpush1.xpose.msra.mxu0 0.0
        %295 = vmatprep.subr.mxu0 0.0
        %296 = vmatpush1.xpose.msra.mxu0 0.0
        %297 = vmatprep.subr.mxu0 0.0
        %298 = vmatpush1.xpose.msra.mxu0 0.0
        %299 = vmatprep.subr.mxu0 0.0
        %300 = vmatpush1.xpose.msra.mxu0 0.0
        %301 = vmatprep.subr.mxu0 0.0
        %302 = vmatpush1.xpose.msra.mxu0 0.0
        %303 = vmatprep.subr.mxu0 0.0
        %304 = vmatpush1.xpose.msra.mxu0 0.0
        %305 = vmatprep.subr.mxu0 0.0
        %306 = vmatpush1.xpose.msra.mxu0 0.0
        %307 = vmatprep.subr.mxu0 0.0
        %308 = vmatpush1.xpose.msra.mxu0 0.0
        %309 = vmatprep.subr.mxu0 0.0
        %310 = vmatpush1.xpose.msra.mxu0 0.0
        %311 = vmatprep.subr.mxu0 0.0
        %312 = vmatpush1.xpose.msra.mxu0 0.0
        %313 = vmatprep.subr.mxu0 0.0
        %314 = vmatpush1.xpose.msra.mxu0 0.0
        %315 = vmatprep.subr.mxu0 0.0
        %316 = vmatpush1.xpose.msra.mxu0 0.0
        %317 = vmatprep.subr.mxu0 0.0
        %318 = vmatpush1.xpose.msra.mxu0 0.0
        %319 = vmatprep.subr.mxu0 0.0
        %320 = vmatpush1.xpose.msra.mxu0 0.0
        %321 = vmatprep.subr.mxu0 0.0
        %322 = vmatpush1.xpose.msra.mxu0 0.0
        %323 = vmatprep.subr.mxu0 0.0
        %324 = vmatpush1.xpose.msra.mxu0 0.0
        %325 = vmatprep.subr.mxu0 0.0
        %326 = vmatpush1.xpose.msra.mxu0 0.0
        %327 = vmatprep.subr.mxu0 0.0
        %328 = vmatpush1.xpose.msra.mxu0 0.0
        %329 = vmatprep.subr.mxu0 0.0
        %330 = vmatpush1.xpose.msra.mxu0 0.0
        %331 = vmatprep.mubr.f32.mxu0 0.0
        %332 = vmatmul.mubr.f32.gmra.mrb[0].mxu0 %v257
        %v333 = vpop.f32.mrb[0].mxu0
        %v334 = vadd.f32 0.0, %v333
        %v335 = vpop.f32.mrb[0].mxu0
        %336 = vmatprep.mubr.f32.mxu0 0.0
        %337 = vmatmul.mubr.f32.gmra.mrb[0].mxu0 %v258
        %v338 = vpop.f32.mrb[0].mxu0
        %v339 = vadd.f32 0.0, %v338
        %v340 = vpop.f32.mrb[0].mxu0
        %341 = vmatprep.mubr.f32.mxu0 0.0
        %342 = vmatmul.mubr.f32.gmra.mrb[0].mxu0 %v259
        %v343 = vpop.f32.mrb[0].mxu0
        %v344 = vadd.f32 0.0, %v343
        %v345 = vpop.f32.mrb[0].mxu0
        %346 = vmatprep.mubr.f32.mxu0 0.0
        %347 = vmatmul.mubr.f32.gmra.mrb[0].mxu0 %v260
        %v348 = vpop.f32.mrb[0].mxu0
        %v349 = vadd.f32 0.0, %v348
        %v350 = vpop.f32.mrb[0].mxu0
        %351 = vmatprep.mubr.f32.mxu0 0.0
        %352 = vmatmul.mubr.f32.gmra.mrb[0].mxu0 %v261
        %v353 = vpop.f32.mrb[0].mxu0
        %v354 = vadd.f32 0.0, %v353
        %v355 = vpop.f32.mrb[0].mxu0
        %356 = vmatprep.mubr.f32.mxu0 0.0
        %357 = vmatmul.mubr.f32.gmra.mrb[0].mxu0 %v262
        %v358 = vpop.f32.mrb[0].mxu0
        %v359 = vadd.f32 0.0, %v358
        %v360 = vpop.f32.mrb[0].mxu0
        %361 = vmatprep.mubr.f32.mxu0 0.0
        %362 = vmatmul.mubr.f32.gmra.mrb[0].mxu0 %v263
        %v363 = vpop.f32.mrb[0].mxu0
        %v364 = vadd.f32 0.0, %v363
        %v365 = vpop.f32.mrb[0].mxu0
        %366 = vmatprep.mubr.f32.mxu0 0.0
        %367 = vmatmul.mubr.f32.gmra.mrb[0].mxu0 %v264
        %v368 = vpop.f32.mrb[0].mxu0
        %v369 = vadd.f32 0.0, %v368
        %v370 = vpop.f32.mrb[0].mxu0
        %371 = vdwg.mxu0
        %v372 = vmul.f32 %v334, 200.0
        %v373 = vmul.f32 %v339, 200.0
        %v374 = vmul.f32 %v344, 200.0
        %v375 = vmul.f32 %v349, 200.0
        %v376 = vmul.f32 %v354, 200.0
        %v377 = vmul.f32 %v359, 200.0
        %v378 = vmul.f32 %v364, 200.0
        %v379 = vmul.f32 %v369, 200.0
        %v380 = vld [vmem:[%s2] sm:$0x1]
        %v382 = vlaneseq
        %v383 = vshrl.u32 %v382, 7
        %v384 = vsub.s32 0, %v383
        %v385 = vrot.slane %v380, %v384
        %v387 = vadd.f32 %v372, %v385
        %v388 = vadd.f32 %v373, %v385
        %v389 = vadd.f32 %v374, %v385
        %v390 = vadd.f32 %v375, %v385
        %v391 = vadd.f32 %v376, %v385
        %v392 = vadd.f32 %v377, %v385
        %v393 = vadd.f32 %v378, %v385
        %v394 = vadd.f32 %v379, %v385
        %vm395 = vcmask 130048
        %v396 = vsel %vm395, %v387, -inf
        %397 = vmax.xlane.f32.xlu0 %v396
        %v398 = vpop.xlane.xlu0 %397
        %v399 = vsel %vm395, %v388, -inf
        %400 = vmax.xlane.f32.xlu0 %v399
        %v401 = vpop.xlane.xlu0 %400
        %v402 = vsel %vm395, %v389, -inf
        %403 = vmax.xlane.f32.xlu0 %v402
        %v404 = vpop.xlane.xlu0 %403
        %v405 = vsel %vm395, %v390, -inf
        %406 = vmax.xlane.f32.xlu0 %v405
        %v407 = vpop.xlane.xlu0 %406
        %v408 = vsel %vm395, %v391, -inf
        %409 = vmax.xlane.f32.xlu0 %v408
        %v410 = vpop.xlane.xlu0 %409
        %v411 = vsel %vm395, %v392, -inf
        %412 = vmax.xlane.f32.xlu0 %v411
        %v413 = vpop.xlane.xlu0 %412
        %v414 = vsel %vm395, %v393, -inf
        %415 = vmax.xlane.f32.xlu0 %v414
        %v416 = vpop.xlane.xlu0 %415
        %v417 = vsel %vm395, %v394, -inf
        %418 = vmax.xlane.f32.xlu0 %v417
        %v419 = vpop.xlane.xlu0 %418
        %v420 = vsub.f32 %v387, %v398
        %v421 = vsub.f32 %v388, %v401
        %v422 = vsub.f32 %v389, %v404
        %v423 = vsub.f32 %v390, %v407
        %v424 = vsub.f32 %v391, %v410
        %v425 = vsub.f32 %v392, %v413
        %v426 = vsub.f32 %v393, %v416
        %v427 = vsub.f32 %v394, %v419
        %v428 = vmul.f32 %v420, 1.442695
        %v429 = vpow.pop %v428
        %v430 = vmul.f32 %v421, 1.442695
        %v431 = vpow.pop %v430
        %v432 = vmul.f32 %v422, 1.442695
        %v433 = vpow.pop %v432
        %v434 = vmul.f32 %v423, 1.442695
        %v435 = vpow.pop %v434
        %v436 = vmul.f32 %v424, 1.442695
        %v437 = vpow.pop %v436
        %v438 = vmul.f32 %v425, 1.442695
        %v439 = vpow.pop %v438
        %v440 = vmul.f32 %v426, 1.442695
        %v441 = vpow.pop %v440
        %v442 = vmul.f32 %v427, 1.442695
        %v443 = vpow.pop %v442
        %v444 = vsel %vm395, %v429, 0.0
        %445 = vadd.xlane.f32.xlu0 %v444
        %v446 = vpop.xlane.xlu0 %445
        %v447 = vsel %vm395, %v431, 0.0
        %448 = vadd.xlane.f32.xlu0 %v447
        %v449 = vpop.xlane.xlu0 %448
        %v450 = vsel %vm395, %v433, 0.0
        %451 = vadd.xlane.f32.xlu0 %v450
        %v452 = vpop.xlane.xlu0 %451
        %v453 = vsel %vm395, %v435, 0.0
        %454 = vadd.xlane.f32.xlu0 %v453
        %v455 = vpop.xlane.xlu0 %454
        %v456 = vsel %vm395, %v437, 0.0
        %457 = vadd.xlane.f32.xlu0 %v456
        %v458 = vpop.xlane.xlu0 %457
        %v459 = vsel %vm395, %v439, 0.0
        %460 = vadd.xlane.f32.xlu0 %v459
        %v461 = vpop.xlane.xlu0 %460
        %v462 = vsel %vm395, %v441, 0.0
        %463 = vadd.xlane.f32.xlu0 %v462
        %v464 = vpop.xlane.xlu0 %463
        %v465 = vsel %vm395, %v443, 0.0
        %466 = vadd.xlane.f32.xlu0 %v465
        %v467 = vpop.xlane.xlu0 %466
        %v468 = vrcp.pop %v446
        %v469 = vrcp.pop %v449
        %v470 = vrcp.pop %v452
        %v471 = vrcp.pop %v455
        %v472 = vrcp.pop %v458
        %v473 = vrcp.pop %v461
        %v474 = vrcp.pop %v464
        %v475 = vrcp.pop %v467
        %v476 = vmul.f32 %v429, %v468
        %v477 = vmul.f32 %v431, %v469
        %v478 = vmul.f32 %v433, %v470
        %v479 = vmul.f32 %v435, %v471
        %v480 = vmul.f32 %v437, %v472
        %v481 = vmul.f32 %v439, %v473
        %v482 = vmul.f32 %v441, %v474
        %v483 = vmul.f32 %v443, %v475
        %v484 = vsel %vm395, %v476, 0.0
        %v485 = vsel %vm395, %v477, 0.0
        %v486 = vadd.f32 %v484, %v485
        %v487 = vsel %vm395, %v478, 0.0
        %v488 = vadd.f32 %v486, %v487
        %v489 = vsel %vm395, %v479, 0.0
        %v490 = vadd.f32 %v488, %v489
        %v491 = vsel %vm395, %v480, 0.0
        %v492 = vadd.f32 %v490, %v491
        %v493 = vsel %vm395, %v481, 0.0
        %v494 = vadd.f32 %v492, %v493
        %v495 = vsel %vm395, %v482, 0.0
        %v496 = vadd.f32 %v494, %v495
        %v497 = vsel %vm395, %v483, 0.0
        %v498 = vadd.f32 %v496, %v497
        %v499 = vrot.slane %v498, 4
        %v500 = vadd.f32 %v498, %v499
        %v501 = vrot.slane %v500, 2
        %v502 = vadd.f32 %v500, %v501
        %v503 = vrot.slane %v502, 1
        %v504 = vadd.f32 %v502, %v503
        %505 = vxpose.xlu0.b32.start [1/16] %v476, 128
        %506 = vxpose.xlu0.b32.cont [2/16] %v477, 128
        %507 = vxpose.xlu0.b32.cont [3/16] %v478, 128
        %508 = vxpose.xlu0.b32.cont [4/16] %v479, 128
        %509 = vxpose.xlu0.b32.cont [5/16] %v480, 128
        %510 = vxpose.xlu0.b32.cont [6/16] %v481, 128
        %511 = vxpose.xlu0.b32.cont [7/16] %v482, 128
        %512 = vxpose.xlu0.b32.cont [8/16] %v483, 128
        %513 = vxpose.xlu0.b32.cont [9/16] 0.0, 128
        %514 = vxpose.xlu0.b32.cont [10/16] 0.0, 128
        %515 = vxpose.xlu0.b32.cont [11/16] 0.0, 128
        %516 = vxpose.xlu0.b32.cont [12/16] 0.0, 128
        %517 = vxpose.xlu0.b32.cont [13/16] 0.0, 128
        %518 = vxpose.xlu0.b32.cont [14/16] 0.0, 128
        %519 = vxpose.xlu0.b32.cont [15/16] 0.0, 128
        %520 = vxpose.xlu0.b32.end [16/16] 0.0, 128
        %v521 = vpop.trf.xlu0
        %v522 = vpop.trf.xlu0
        %v523 = vpop.trf.xlu0
        %v524 = vpop.trf.xlu0
        %v525 = vpop.trf.xlu0
        %v526 = vpop.trf.xlu0
        %v527 = vpop.trf.xlu0
        %v528 = vpop.trf.xlu0
        %v529 = vpop.trf.xlu0
        %v530 = vpop.trf.xlu0
        %v531 = vpop.trf.xlu0
        %v532 = vpop.trf.xlu0
        %v533 = vpop.trf.xlu0
        %v534 = vpop.trf.xlu0
        %v535 = vpop.trf.xlu0
        %v536 = vpop.trf.xlu0
        %vm537 = vcmask 523264
        %v539 = vsel %vm537, %v521, 0
        %v542 = vsel %vm537, %v522, 0
        %544 = vmatprep.subr.mxu0 0.0
        %545 = vmatpush1.msra.mxu0 %v257
        %546 = vmatprep.subr.mxu0 0.0
        %547 = vmatpush1.msra.mxu0 %v258
        %548 = vmatprep.subr.mxu0 0.0
        %549 = vmatpush1.msra.mxu0 %v259
        %550 = vmatprep.subr.mxu0 0.0
        %551 = vmatpush1.msra.mxu0 %v260
        %552 = vmatprep.subr.mxu0 0.0
        %553 = vmatpush1.msra.mxu0 %v261
        %554 = vmatprep.subr.mxu0 0.0
        %555 = vmatpush1.msra.mxu0 %v262
        %556 = vmatprep.subr.mxu0 0.0
        %557 = vmatpush1.msra.mxu0 %v263
        %558 = vmatprep.subr.mxu0 0.0
        %559 = vmatpush1.msra.mxu0 %v264
        %560 = vmatprep.subr.mxu0 0.0
        %561 = vmatpush1.msra.mxu0 0.0
        %562 = vmatprep.subr.mxu0 0.0
        %563 = vmatpush1.msra.mxu0 0.0
        %564 = vmatprep.subr.mxu0 0.0
        %565 = vmatpush1.msra.mxu0 0.0
        %566 = vmatprep.subr.mxu0 0.0
        %567 = vmatpush1.msra.mxu0 0.0
        %568 = vmatprep.subr.mxu0 0.0
        %569 = vmatpush1.msra.mxu0 0.0
        %570 = vmatprep.subr.mxu0 0.0
        %571 = vmatpush1.msra.mxu0 0.0
        %572 = vmatprep.subr.mxu0 0.0
        %573 = vmatpush1.msra.mxu0 0.0
        %574 = vmatprep.subr.mxu0 0.0
        %575 = vmatpush1.msra.mxu0 0.0
        %576 = vmatprep.subr.mxu0 0.0
        %577 = vmatpush1.msra.mxu0 0.0
        %578 = vmatprep.subr.mxu0 0.0
        %579 = vmatpush1.msra.mxu0 0.0
        %580 = vmatprep.subr.mxu0 0.0
        %581 = vmatpush1.msra.mxu0 0.0
        %582 = vmatprep.subr.mxu0 0.0
        %583 = vmatpush1.msra.mxu0 0.0
        %584 = vmatprep.subr.mxu0 0.0
        %585 = vmatpush1.msra.mxu0 0.0
        %586 = vmatprep.subr.mxu0 0.0
        %587 = vmatpush1.msra.mxu0 0.0
        %588 = vmatprep.subr.mxu0 0.0
        %589 = vmatpush1.msra.mxu0 0.0
        %590 = vmatprep.subr.mxu0 0.0
        %591 = vmatpush1.msra.mxu0 0.0
        %592 = vmatprep.subr.mxu0 0.0
        %593 = vmatpush1.msra.mxu0 0.0
        %594 = vmatprep.subr.mxu0 0.0
        %595 = vmatpush1.msra.mxu0 0.0
        %596 = vmatprep.subr.mxu0 0.0
        %597 = vmatpush1.msra.mxu0 0.0
        %598 = vmatprep.subr.mxu0 0.0
        %599 = vmatpush1.msra.mxu0 0.0
        %600 = vmatprep.subr.mxu0 0.0
        %601 = vmatpush1.msra.mxu0 0.0
        %602 = vmatprep.subr.mxu0 0.0
        %603 = vmatpush1.msra.mxu0 0.0
        %604 = vmatprep.subr.mxu0 0.0
        %605 = vmatpush1.msra.mxu0 0.0
        %606 = vmatprep.subr.mxu0 0.0
        %607 = vmatpush1.msra.mxu0 0.0
        %608 = vmatprep.mubr.f32.mxu0 0.0
        %609 = vmatmul.mubr.f32.gmra.mrb[0].mxu0 %v539
        %v610 = vpop.f32.mrb[0].mxu0
        %v611 = vadd.f32 0.0, %v610
        %v612 = vpop.f32.mrb[0].mxu0
        %613 = vmatprep.mubr.f32.mxu0 0.0
        %614 = vmatmul.mubr.f32.gmra.mrb[0].mxu0 %v542
        %v615 = vpop.f32.mrb[0].mxu0
        %v616 = vadd.f32 0.0, %v615
        %v617 = vpop.f32.mrb[0].mxu0
        %618 = vdwg.mxu0
        %620 = vbcast.lane.b32.xlu0 %v504, 256
        %v621 = vpop.permute.xlu0 %620
        %s623 = sor.u32 256, 8
        %624 = vbcast.lane.b32.xlu0 %v504, %s623
        %v625 = vpop.permute.xlu0 %624
        %v626 = vmul.f32 %v621, %v265
        %v627 = vmul.f32 %v625, %v266
        %v628 = vsub.f32 %v611, %v626
        %v629 = vsub.f32 %v616, %v627
        %v630 = vmul.f32 %v628, %v628
        %v631 = vmul.f32 %v629, %v629
        %632 = vadd.xlane.f32.xlu0 %v630
        %v633 = vpop.xlane.xlu0 %632
        %634 = vadd.xlane.f32.xlu0 %v631
        %v635 = vpop.xlane.xlu0 %634
        %v636 = vmax.f32 %v633, 1e-24
        %v637 = vmax.f32 %v635, 1e-24
        %v638 = vrsqrt.pop %v636
        %v639 = vrsqrt.pop %v637
        %v640 = vmul.f32 %v638, %v638
        %v641 = vmul.f32 %v639, %v639
        %v642 = vmul.f32 %v633, %v640
        %v643 = vmul.f32 %v635, %v641
        %v644 = vadd.f32 %v642, %v643
        %v645 = vrot.slane %v644, 4
        %v646 = vadd.f32 %v644, %v645
        %v647 = vrot.slane %v646, 2
        %v648 = vadd.f32 %v646, %v647
        %v649 = vrot.slane %v648, 1
        %v650 = vadd.f32 %v648, %v649
        %v651 = vmax.f32 %v650, 1e-24
        %v652 = vrsqrt.pop %v651
        %v653 = vmul.f32 %v638, %v652
        %v654 = vmul.f32 %v639, %v652
        %v655 = vmul.f32 %v628, %v653
        %v656 = vmul.f32 %v629, %v654
        %657 = vst [vmem:[%s163] sm:$0xff] %v655
        %658 = vst [vmem:[%s163 + $0x8] sm:$0xff] %v656
        %s659 = sand.u32 %s93, 1
        %s660 = scalar_lea.sflag [#allocation3], %s659
        %s661 = sand.u32 %s93, 1
        %s662 = smul.addr %s661, 16
        %s663 = scalar_lea.vmem [#allocation2], %s662
        // Predicated region
        $region33: #{tpu_custom_call.1} parent=31 // pred_check
          %p664 = pneg %p103
        $region34: #{tpu_custom_call.1} parent=31 // pred_check_branch
          %666 = sbr.rel (%p664) target = $region36
        $region35: #{tpu_custom_call.1} parent=31 // pred_region
          %s668 = ssub.s32 256, 256
          %669 = vsyncadd %s660, %s668
          %s670 = smul.addr %s17, 2
          %s671 = smul.addr %s670, 128
          %s672 = scalar_lea.hbm %s3, %s671
          %s673 = sshll.u32 %s663, 4
          %s674 = int_to_ptr.vmem [resolvable:$true] %s673
          %679 = dma.vmem_to_hbm [thread:$0]  %s674, 256, %s672, %s660, 128, 128, 8
        $region36: #{tpu_custom_call.1} parent=31 // pred_fallthru
          _
      $region32: #{tpu_custom_call.1} parent=5 // pred_fallthru
        _
      %p680 = scmp.le.s32.totalorder 2, %s12
      // Predicated region
      $region37: #{tpu_custom_call.1} parent=5 // pred_check
        %p681 = pneg %p680
      $region38: #{tpu_custom_call.1} parent=5 // pred_check_branch
        %683 = sbr.rel (%p681) target = $region40
      $region39: #{tpu_custom_call.1} parent=5 // pred_region
        %s684 = ssub.s32 %s12, 2
        // Predicated region
        $region41: #{tpu_custom_call.1} parent=39 // pred_check
          %p685 = pneg %p109
        $region42: #{tpu_custom_call.1} parent=39 // pred_check_branch
          %687 = sbr.rel (%p685) target = $region44
        $region43: #{tpu_custom_call.1} parent=39 // pred_region
          %s688 = sand.u32 %s94, 1
          %s689 = scalar_lea.sflag [#allocation3], %s688
          %s690 = sand.u32 %s94, 1
          %s691 = smul.addr %s690, 16
          %s692 = scalar_lea.vmem [#allocation2], %s691
          %693 = dma.done %s689, 256
        $region44: #{tpu_custom_call.1} parent=39 // pred_fallthru
          _
      $region40: #{tpu_custom_call.1} parent=5 // pred_fallthru
        _
    $region6: #{tpu_custom_call.1} parent=1 // loop_footer
      %s16 = sadd.s32 1, %s12
    $region7: #{tpu_custom_call.1} parent=1 // loop_footer_branch
      %11 = sbr.rel target = $region3
    $region8: #{tpu_custom_call.1} parent=1 // loop_exit
      _
    %694 = vsyncpa [#allocation3], 1
    %s695 = scalar_lea.sflag [#allocation3], 1
    %696 = vsyncpa %s695, 1

</llo_original>
